<compile_context>
chip_gen: v7x
topology: tpu7x:2x2x1
jax: 0.10.0
libtpu: 0.0.40
codegen_flags: <defaults>
</compile_context>

<pallas_src>
import jax
import jax.numpy as jnp
from jax.experimental import pallas as pl
from jax.experimental.pallas import tpu as pltpu


_TM_TARGET = 16 * 1024                 # max lane tile over flattened H/2*W/2
_VMEM_TILE_BUDGET = 24 * 1024 * 1024   # per-step VMEM budget (under 32 MiB scoped default)


# --------------------------------------------------------------------------
# Pallas kernel: fused 1x1-conv (as W @ X), folded BatchNorm affine, SiLU.
#   x_ref:     (1, K, tm)  bf16   space-to-depth activations (lane dim = spatial)
#   w_ref:     (N, K)      bf16   1x1 conv weight (resident)
#   scale_ref: (N, 1)      f32    gamma / sqrt(var + eps)
#   shift_ref: (N, 1)      f32    beta - mean * scale
#   o_ref:     (1, N, tm)  bf16   output (already NCHW-ordered)
# --------------------------------------------------------------------------
def _focus_conv_kernel(x_ref, w_ref, scale_ref, shift_ref, o_ref):
    acc = jnp.dot(w_ref[...], x_ref[0], preferred_element_type=jnp.float32)  # (N, tm)
    y = acc * scale_ref[...] + shift_ref[...]                                # BN affine, f32
    # SiLU with one transcendental per element: y*sigmoid(y) = 0.5*y*(1+tanh(y/2))
    o_ref[0] = (0.5 * y * (1.0 + jnp.tanh(0.5 * y))).astype(o_ref.dtype)


def _pick_tile(b, m, k, n, out_bytes):
    """Choose the lane tile tm and (possibly padded) M so that m_pad % tm == 0."""
    k_pad = max(16, ((k + 15) // 16) * 16)  # bf16 sublane packing of K
    # Per lane column: double-buffered bf16 act + double-buffered out
    # + f32 accumulator + one f32 epilogue temporary.
    per_lane = 2 * k_pad * 2 + 2 * n * out_bytes + 2 * n * 4
    tm_max = min(_TM_TARGET,
                 max(128, (_VMEM_TILE_BUDGET // per_lane) // 128 * 128))

    if m <= tm_max:
        tm, m_pad = m, m                      # single full-dim tile, no pad
    else:
        tm, m_pad = 0, m
        # Largest multiple of 128 <= tm_max dividing m (no pad pass needed).
        for cand in range(tm_max // 128, 0, -1):
            if m % (cand * 128) == 0:
                tm = cand * 128
                break
        if tm == 0:                           # rare fallback: pad M
            tm = tm_max
            m_pad = ((m + tm - 1) // tm) * tm

    # v7x dual-TC balance: prefer >= 4 grid tiles when halving keeps a
    # multiple-of-128 tile that still divides m_pad.
    while b * (m_pad // tm) < 4 and tm % 256 == 0 and tm >= 1024:
        tm //= 2
    return tm, m_pad


def _fused_conv_bn_silu(x4, w_mat, scale, shift, *, tm, out_dtype):
    b, k, m = x4.shape
    n = w_mat.shape[0]
    grid = (b, m // tm)

    out_bytes = jnp.dtype(out_dtype).itemsize
    flops = 2 * b * n * k * m + 6 * b * n * m
    bytes_accessed = (b * k * m * 2) + (n * k * 2) + (2 * n * 4) + (b * n * m * out_bytes)

    return pl.pallas_call(
        _focus_conv_kernel,
        out_shape=jax.ShapeDtypeStruct((b, n, m), out_dtype),
        grid_spec=pltpu.PrefetchScalarGridSpec(
            num_scalar_prefetch=0,
            grid=grid,
            in_specs=[
                pl.BlockSpec((1, k, tm), lambda bi, mi: (bi, 0, mi)),
                pl.BlockSpec((n, k), lambda bi, mi: (0, 0)),      # resident weight
                pl.BlockSpec((n, 1), lambda bi, mi: (0, 0)),      # resident scale
                pl.BlockSpec((n, 1), lambda bi, mi: (0, 0)),      # resident shift
            ],
            out_specs=pl.BlockSpec((1, n, tm), lambda bi, mi: (bi, 0, mi)),
        ),
        compiler_params=pltpu.CompilerParams(
            dimension_semantics=("parallel", "parallel"),
            vmem_limit_bytes=32 * 1024 * 1024,   # safe on v5e/v6e/v7x
        ),
        cost_estimate=pl.CostEstimate(
            flops=flops,
            transcendentals=b * n * m,           # one tanh per output element
            bytes_accessed=bytes_accessed,
        ),
    )(x4, w_mat, scale, shift)


# --------------------------------------------------------------------------
# Focus forward (wrapper)
# --------------------------------------------------------------------------
def focus_forward(x_nchw, params, *, out_dtype=jnp.bfloat16):
    """x_nchw: (B, C, H, W) float32. Returns (B, out_channels, H//2, W//2) out_dtype."""
    b, c, h, w = x_nchw.shape
    assert h % 2 == 0 and w % 2 == 0, "Focus requires even spatial dims"
    h2, w2 = h // 2, w // 2
    k = 4 * c
    n = params["weight"].shape[0]
    m_sp = h2 * w2

    # Space-to-depth as ONE fused reshape + transpose + cast producing
    # (B, 4C, H/2*W/2) bf16 directly.  Flattened (cp, rp, c) channel order
    # matches torch.cat((top_left, bot_left, top_right, bot_right), dim=1).
    x6 = x_nchw.reshape(b, c, h2, 2, w2, 2)                  # (b, c, h2, rp, w2, cp)
    x4 = jnp.transpose(x6, (0, 5, 3, 1, 2, 4))               # (b, cp, rp, c, h2, w2)
    x4 = x4.reshape(b, k, m_sp).astype(jnp.bfloat16)         # bf16 activations for MXU

    # 1x1 conv weight (N, 4C, 1, 1) -> (N, K) used as LHS of W @ X.
    w_mat = params["weight"].reshape(n, k).astype(jnp.bfloat16)

    # Fold BatchNorm (eval mode; module spec: eps=0.001) into a per-channel affine.
    eps = 1e-3
    scale = params["gamma"] / jnp.sqrt(params["running_var"] + eps)
    shift = params["beta"] - params["running_mean"] * scale
    scale = scale.reshape(n, 1).astype(jnp.float32)
    shift = shift.reshape(n, 1).astype(jnp.float32)

    tm, m_pad = _pick_tile(b, m_sp, k, n, jnp.dtype(out_dtype).itemsize)
    if m_pad != m_sp:   # rare fallback only (tm normally divides m_sp)
        x4 = jnp.pad(x4, ((0, 0), (0, 0), (0, m_pad - m_sp)))

    out = _fused_conv_bn_silu(x4, w_mat, scale, shift, tm=tm, out_dtype=out_dtype)
    if m_pad != m_sp:
        out = out[:, :, :m_sp]
    # Output is already channel-major: NCHW needs only a (free) reshape.
    return out.reshape(b, n, h2, w2)


# --------------------------------------------------------------------------
# Deterministic parameter init (Conv2dModule uses bias=False with BN)
# --------------------------------------------------------------------------
def init_focus_params(key, in_channels, out_channels, kernel_size=1):
    assert kernel_size == 1, "This Focus implementation uses the default 1x1 conv."
    k_w, k_g, k_b = jax.random.split(key, 3)
    fan_in = in_channels * 4 * kernel_size * kernel_size
    bound = 1.0 / jnp.sqrt(fan_in)
    weight = jax.random.uniform(
        k_w, (out_channels, in_channels * 4, 1, 1),
        minval=-bound, maxval=bound, dtype=jnp.float32)
    gamma = 1.0 + 0.1 * jax.random.normal(k_g, (out_channels,), dtype=jnp.float32)
    beta = 0.1 * jax.random.normal(k_b, (out_channels,), dtype=jnp.float32)
    running_mean = jnp.zeros((out_channels,), jnp.float32)
    running_var = jnp.ones((out_channels,), jnp.float32)
    return {
        "weight": weight,
        "gamma": gamma,
        "beta": beta,
        "running_mean": running_mean,
        "running_var": running_var,
    }


# --------------------------------------------------------------------------
# Pure-JAX reference (mirrors the PyTorch forward).  `matmul_dtype` applies
# the same bf16 quantization of the matmul operands for a tighter check.
# --------------------------------------------------------------------------
def focus_reference(x_nchw, params, matmul_dtype=None):
    tl = x_nchw[..., ::2, ::2]
    tr = x_nchw[..., ::2, 1::2]
    bl = x_nchw[..., 1::2, ::2]
    br = x_nchw[..., 1::2, 1::2]
    x4 = jnp.concatenate((tl, bl, tr, br), axis=1)
    wgt = params["weight"]
    if matmul_dtype is not None:
        x4 = x4.astype(matmul_dtype).astype(jnp.float32)
        wgt = wgt.astype(matmul_dtype).astype(jnp.float32)
    y = jax.lax.conv_general_dilated(
        x4, wgt, window_strides=(1, 1), padding="VALID",
        dimension_numbers=("NCHW", "OIHW", "NCHW"))
    eps = 1e-3
    scale = params["gamma"] / jnp.sqrt(params["running_var"] + eps)
    shift = params["beta"] - params["running_mean"] * scale
    y = y * scale[None, :, None, None] + shift[None, :, None, None]
    return y * jax.nn.sigmoid(y)


if __name__ == "__main__":
    key = jax.random.PRNGKey(0)
    k_x, k_p = jax.random.split(key)

    B, C, H, W = 2, 4, 16, 16
    OUT_CH = 8

    x = jax.random.normal(k_x, (B, C, H, W), dtype=jnp.float32)
    params = init_focus_params(k_p, in_channels=C, out_channels=OUT_CH)

    focus_fn = jax.jit(focus_forward)
    out = jax.block_until_ready(focus_fn(x, params))
    assert out.shape == (B, OUT_CH, H // 2, W // 2), out.shape
    out_f32 = out.astype(jnp.float32)

    # Tight check vs. a reference with identical bf16 operand quantization and
    # bf16 output rounding (remaining diff: accumulation order + tanh-vs-exp
    # sigmoid formulation + epilogue rounding).
    ref_q = jax.block_until_ready(focus_reference(x, params, matmul_dtype=jnp.bfloat16))
    ref_q_b = ref_q.astype(jnp.bfloat16).astype(jnp.float32)
    assert jnp.allclose(out_f32, ref_q_b, atol=3e-2, rtol=3e-2), (
        float(jnp.max(jnp.abs(out_f32 - ref_q_b))))

    # Loose check vs. the full-f32 reference (operand + output bf16 quantization).
    ref_f = jax.block_until_ready(focus_reference(x, params))
    assert jnp.allclose(out_f32, ref_f, atol=6e-2, rtol=6e-2), (
        float(jnp.max(jnp.abs(out_f32 - ref_f))))

    print("KERNEL_OK")
</pallas_src>

<mosaic_0001>
module attributes {stable_mosaic.version = 11 : i64} {
  func.func @_focus_conv_kernel(%arg0: i32, %arg1: i32, %arg2: memref<1x16x64xbf16, #tpu.memory_space<vmem>>, %arg3: memref<8x16xbf16, #tpu.memory_space<vmem>>, %arg4: memref<8x1xf32, #tpu.memory_space<vmem>>, %arg5: memref<8x1xf32, #tpu.memory_space<vmem>>, %arg6: memref<1x8x64xbf16, #tpu.memory_space<vmem>>) attributes {dimension_semantics = [#tpu.dimension_semantics<parallel>, #tpu.dimension_semantics<parallel>], iteration_bounds = array<i64: 2, 1>, scalar_prefetch = 0 : i64, scratch_operands = 0 : i64, tpu.core_type = #tpu.core_type<tc>, window_params = [{transform_indices = @transform_0, window_bounds = array<i64: 1, 16, 64>}, {pipeline_mode = #tpu.pipeline_mode<synchronous>, transform_indices = @transform_1, window_bounds = array<i64: 8, 16>}, {pipeline_mode = #tpu.pipeline_mode<synchronous>, transform_indices = @transform_2, window_bounds = array<i64: 8, 1>}, {pipeline_mode = #tpu.pipeline_mode<synchronous>, transform_indices = @transform_3, window_bounds = array<i64: 8, 1>}, {transform_indices = @transform_4, window_bounds = array<i64: 1, 8, 64>}]} {
    %c0 = arith.constant 0 : index
    %c0_0 = arith.constant 0 : index
    %0 = vector.load %arg3[%c0, %c0_0] : memref<8x16xbf16, #tpu.memory_space<vmem>>, vector<8x16xbf16>
    %c0_1 = arith.constant 0 : index
    %c0_2 = arith.constant 0 : index
    %c0_3 = arith.constant 0 : index
    %1 = vector.load %arg2[%c0_1, %c0_2, %c0_3] : memref<1x16x64xbf16, #tpu.memory_space<vmem>>, vector<1x16x64xbf16>
    %2 = vector.shape_cast %1 : vector<1x16x64xbf16> to vector<16x64xbf16>
    %cst = arith.constant dense<0.000000e+00> : vector<8x64xf32>
    %3 = tpu.matmul %0, %2, %cst {dimension_numbers = #tpu.dot_dimension_numbers<[1], [0], [0], [1], [0, 0, 1, 1], [], []>} : vector<8x16xbf16>, vector<16x64xbf16>, vector<8x64xf32> -> vector<8x64xf32>
    %c0_4 = arith.constant 0 : index
    %c0_5 = arith.constant 0 : index
    %4 = vector.load %arg4[%c0_4, %c0_5] : memref<8x1xf32, #tpu.memory_space<vmem>>, vector<8x1xf32>
    %5 = vector.broadcast %4 : vector<8x1xf32> to vector<8x64xf32>
    %6 = arith.mulf %3, %5 : vector<8x64xf32>
    %c0_6 = arith.constant 0 : index
    %c0_7 = arith.constant 0 : index
    %7 = vector.load %arg5[%c0_6, %c0_7] : memref<8x1xf32, #tpu.memory_space<vmem>>, vector<8x1xf32>
    %8 = vector.broadcast %7 : vector<8x1xf32> to vector<8x64xf32>
    %9 = arith.addf %6, %8 : vector<8x64xf32>
    %cst_8 = arith.constant 5.000000e-01 : f32
    %10 = vector.broadcast %cst_8 : f32 to vector<8x64xf32>
    %11 = arith.mulf %10, %9 : vector<8x64xf32>
    %cst_9 = arith.constant 5.000000e-01 : f32
    %12 = vector.broadcast %cst_9 : f32 to vector<8x64xf32>
    %13 = arith.mulf %12, %9 : vector<8x64xf32>
    %14 = math.tanh %13 : vector<8x64xf32>
    %cst_10 = arith.constant 1.000000e+00 : f32
    %15 = vector.broadcast %cst_10 : f32 to vector<8x64xf32>
    %16 = arith.addf %15, %14 : vector<8x64xf32>
    %17 = arith.mulf %11, %16 : vector<8x64xf32>
    %18 = arith.truncf %17 : vector<8x64xf32> to vector<8x64xbf16>
    %c0_11 = arith.constant 0 : index
    %c0_12 = arith.constant 0 : index
    %c0_13 = arith.constant 0 : index
    %19 = vector.load %arg6[%c0_11, %c0_12, %c0_13] : memref<1x8x64xbf16, #tpu.memory_space<vmem>>, vector<1x8x64xbf16>
    %20 = vector.shape_cast %19 : vector<1x8x64xbf16> to vector<8x64xbf16>
    %21 = vector.shape_cast %18 : vector<8x64xbf16> to vector<1x8x64xbf16>
    tpu.vector_store %arg6[%c0_11, %c0_12, %c0_13], %21 {strides = array<i32>} : memref<1x8x64xbf16, #tpu.memory_space<vmem>>, vector<1x8x64xbf16>,
    return
  }
  func.func @transform_0(%arg0: i32, %arg1: i32) -> (i32, i32, i32) {
    %c0_i32 = arith.constant 0 : i32
    %c0_i32_0 = arith.constant 0 : i32
    return %arg0, %c0_i32, %arg1 : i32, i32, i32
  }
  func.func @transform_1(%arg0: i32, %arg1: i32) -> (i32, i32) {
    %c0_i32 = arith.constant 0 : i32
    %c0_i32_0 = arith.constant 0 : i32
    %c0_i32_1 = arith.constant 0 : i32
    return %c0_i32, %c0_i32_0 : i32, i32
  }
  func.func @transform_2(%arg0: i32, %arg1: i32) -> (i32, i32) {
    %c0_i32 = arith.constant 0 : i32
    %c0_i32_0 = arith.constant 0 : i32
    %c0_i32_1 = arith.constant 0 : i32
    return %c0_i32, %c0_i32_0 : i32, i32
  }
  func.func @transform_3(%arg0: i32, %arg1: i32) -> (i32, i32) {
    %c0_i32 = arith.constant 0 : i32
    %c0_i32_0 = arith.constant 0 : i32
    %c0_i32_1 = arith.constant 0 : i32
    return %c0_i32, %c0_i32_0 : i32, i32
  }
  func.func @transform_4(%arg0: i32, %arg1: i32) -> (i32, i32, i32) {
    %c0_i32 = arith.constant 0 : i32
    %c0_i32_0 = arith.constant 0 : i32
    return %arg0, %c0_i32, %arg1 : i32, i32, i32
  }
}

</mosaic_0001>

<llo_original>
// kernel: focus_forward.1
$region0: #{focus_forward.1}
  #allocation0 [shape = 'u32[]', space=smem, size = 0x4, offset = 0x4, fixed_abs, tag = 'smem constant byte address 0x4 - core index']
  #allocation1 [shape = 'u32[144,128]{1,0:T(1,128)}', space=vmem, size = 0x12000, scoped, tag = 'internal scratch']
  %s0 = inlined_call_operand.vmem [shape: bf16[2,16,64], index: 0, kind: input, shape index: {}]
  %s1 = inlined_call_operand.vmem [shape: bf16[8,16], index: 1, kind: input, shape index: {}]
  %s2 = inlined_call_operand.vmem [shape: f32[8,1], index: 2, kind: input, shape index: {}]
  %s3 = inlined_call_operand.vmem [shape: f32[8,1], index: 3, kind: input, shape index: {}]
  %s4 = inlined_call_operand.vmem [shape: bf16[2,8,64], index: 4, kind: output, shape index: {}]
  %s5 = sld [smem:[#allocation0]]
  $region49: #{focus_forward.1} parent=0
    _
  %s7 = ssub.s32 1, %s5
  %s8 = scalar_select 0, %s7, %s5
  loop: start=0, step=1, limit=4
  $region2: #{focus_forward.1} parent=0 // loop_pre_header
    _
  $region3: #{focus_forward.1} parent=0 // loop_header
    %s10 = sphi 0, %s14
    %p11 = scmp.ge.s32.totalorder %s10, 4
    %s17 = sphi 0, %s29
    %s18 = sphi 0, %s25
    %s19 = sphi 0, %s17
    %s20 = sphi 0, %s18
    %s21 = sphi 0, %s19
    %s22 = sphi 0, %s20
    %s34 = sphi 0, %s36
    %s37 = sphi 0, %s34
    %s38 = sphi 0, %s37
    %s54 = sphi 0, %s38
    %s58 = sphi 0, %s58
    %s60 = sphi 0, %s58
    %s61 = sphi 0, %s60
    %s75 = sphi 0, %s61
    %s79 = sphi 0, %s79
    %s81 = sphi 0, %s79
    %s82 = sphi 0, %s81
    %s96 = sphi 0, %s82
    %s100 = sphi 0, %s100
    %s102 = sphi 0, %s100
    %s103 = sphi 0, %s102
    %s117 = sphi 0, %s103
    %s125 = sphi 0, %s127
    %s128 = sphi 0, %s125
    %s129 = sphi 0, %s128
    %s145 = sphi 0, %s129
  $region4: #{focus_forward.1} parent=0 // loop_header_branch
    %13 = sbr.rel (%p11) target = $region8
  $region5: #{focus_forward.1} parent=0 // loop_body
    %s15 = ssub.s32 %s10, 1
    %s16 = ssub.s32 %s10, 2
    %s23 = sadd.s32 1, %s18
    %p24 = scmp.ge.s32.totalorder %s23, 1
    %s25 = scalar_select %p24, 0, %s23
    %s26 = sadd.s32 1, %s17
    %s27 = scalar_select %p24, %s26, %s17
    %p28 = scmp.ge.s32.totalorder %s27, 2
    %s29 = scalar_select %p28, 0, %s27
    %s30 = ssub.s32 %s17, %s29
    %s31 = ssub.s32 %s18, %s25
    %s32 = sor.u32 %s30, %s31
    %p33 = scmp.eq.s32.totalorder %s32, 0
    %s35 = sadd.s32 %s34, 1
    %s36 = scalar_select %p33, %s34, %s35
    %p39 = pneg %p33
    %p40 = scmp.eq.s32.totalorder %s10, 1
    %p41 = por %p39, %p40
    %p42 = scmp.ne.s32.totalorder %s34, %s37
    %p43 = scmp.eq.s32.totalorder %s10, 0
    %p44 = por %p42, %p43
    %p45 = scmp.ne.s32.totalorder %s34, %s37
    %p46 = scmp.eq.s32.totalorder %s15, 1
    %p47 = por %p45, %p46
    %p48 = scmp.ne.s32.totalorder %s37, %s38
    %p49 = scmp.eq.s32.totalorder %s15, 0
    %p50 = por %p48, %p49
    %p51 = scmp.ne.s32.totalorder %s37, %s38
    %p52 = scmp.eq.s32.totalorder %s16, 1
    %p53 = por %p51, %p52
    %p55 = scmp.ne.s32.totalorder %s38, %s54
    %p56 = scmp.eq.s32.totalorder %s16, 0
    %p57 = por %p55, %p56
    %s59 = sadd.s32 %s58, 1
    %p62 = scmp.eq.s32.totalorder %s10, 1
    %p63 = scmp.ne.s32.totalorder %s58, %s60
    %p64 = scmp.eq.s32.totalorder %s10, 0
    %p65 = por %p63, %p64
    %p66 = scmp.ne.s32.totalorder %s58, %s60
    %p67 = scmp.eq.s32.totalorder %s15, 1
    %p68 = por %p66, %p67
    %p69 = scmp.ne.s32.totalorder %s60, %s61
    %p70 = scmp.eq.s32.totalorder %s15, 0
    %p71 = por %p69, %p70
    %p72 = scmp.ne.s32.totalorder %s60, %s61
    %p73 = scmp.eq.s32.totalorder %s16, 1
    %p74 = por %p72, %p73
    %p76 = scmp.ne.s32.totalorder %s61, %s75
    %p77 = scmp.eq.s32.totalorder %s16, 0
    %p78 = por %p76, %p77
    %s80 = sadd.s32 %s79, 1
    %p83 = scmp.eq.s32.totalorder %s10, 1
    %p84 = scmp.ne.s32.totalorder %s79, %s81
    %p85 = scmp.eq.s32.totalorder %s10, 0
    %p86 = por %p84, %p85
    %p87 = scmp.ne.s32.totalorder %s79, %s81
    %p88 = scmp.eq.s32.totalorder %s15, 1
    %p89 = por %p87, %p88
    %p90 = scmp.ne.s32.totalorder %s81, %s82
    %p91 = scmp.eq.s32.totalorder %s15, 0
    %p92 = por %p90, %p91
    %p93 = scmp.ne.s32.totalorder %s81, %s82
    %p94 = scmp.eq.s32.totalorder %s16, 1
    %p95 = por %p93, %p94
    %p97 = scmp.ne.s32.totalorder %s82, %s96
    %p98 = scmp.eq.s32.totalorder %s16, 0
    %p99 = por %p97, %p98
    %s101 = sadd.s32 %s100, 1
    %p104 = scmp.eq.s32.totalorder %s10, 1
    %p105 = scmp.ne.s32.totalorder %s100, %s102
    %p106 = scmp.eq.s32.totalorder %s10, 0
    %p107 = por %p105, %p106
    %p108 = scmp.ne.s32.totalorder %s100, %s102
    %p109 = scmp.eq.s32.totalorder %s15, 1
    %p110 = por %p108, %p109
    %p111 = scmp.ne.s32.totalorder %s102, %s103
    %p112 = scmp.eq.s32.totalorder %s15, 0
    %p113 = por %p111, %p112
    %p114 = scmp.ne.s32.totalorder %s102, %s103
    %p115 = scmp.eq.s32.totalorder %s16, 1
    %p116 = por %p114, %p115
    %p118 = scmp.ne.s32.totalorder %s103, %s117
    %p119 = scmp.eq.s32.totalorder %s16, 0
    %p120 = por %p118, %p119
    %s121 = ssub.s32 %s17, %s29
    %s122 = ssub.s32 %s18, %s25
    %s123 = sor.u32 %s121, %s122
    %p124 = scmp.eq.s32.totalorder %s123, 0
    %s126 = sadd.s32 %s125, 1
    %s127 = scalar_select %p124, %s125, %s126
    %p130 = pneg %p124
    %p131 = scmp.eq.s32.totalorder %s10, 1
    %p132 = por %p130, %p131
    %p133 = scmp.ne.s32.totalorder %s125, %s128
    %p134 = scmp.eq.s32.totalorder %s10, 0
    %p135 = por %p133, %p134
    %p136 = scmp.ne.s32.totalorder %s125, %s128
    %p137 = scmp.eq.s32.totalorder %s15, 1
    %p138 = por %p136, %p137
    %p139 = scmp.ne.s32.totalorder %s128, %s129
    %p140 = scmp.eq.s32.totalorder %s15, 0
    %p141 = por %p139, %p140
    %p142 = scmp.ne.s32.totalorder %s128, %s129
    %p143 = scmp.eq.s32.totalorder %s16, 1
    %p144 = por %p142, %p143
    %p146 = scmp.ne.s32.totalorder %s129, %s145
    %p147 = scmp.eq.s32.totalorder %s16, 0
    %p148 = por %p146, %p147
    %p149 = scmp.le.s32.totalorder 1, %s10
    %p150 = scmp.lt.s32.totalorder %s10, 3
    %p151 = pnand %p149, %p150
    %p152 = pneg %p151
    // Predicated region
    $region9: #{focus_forward.1} parent=5 // pred_check
      _
    $region10: #{focus_forward.1} parent=5 // pred_check_branch
      %154 = sbr.rel (%p151) target = $region12
    $region11: #{focus_forward.1} parent=5 // pred_region
      %s155 = ssub.s32 %s10, 1
      // Predicated region
      $region13: #{focus_forward.1} parent=11 // pred_check
        %p156 = pneg %p71
      $region14: #{focus_forward.1} parent=11 // pred_check_branch
        %158 = sbr.rel (%p156) target = $region16
      $region15: #{focus_forward.1} parent=11 // pred_region
        _
      $region16: #{focus_forward.1} parent=11 // pred_fallthru
        _
      // Predicated region
      $region17: #{focus_forward.1} parent=11 // pred_check
        %p159 = pneg %p92
      $region18: #{focus_forward.1} parent=11 // pred_check_branch
        %161 = sbr.rel (%p159) target = $region20
      $region19: #{focus_forward.1} parent=11 // pred_region
        _
      $region20: #{focus_forward.1} parent=11 // pred_fallthru
        _
      // Predicated region
      $region21: #{focus_forward.1} parent=11 // pred_check
        %p162 = pneg %p113
      $region22: #{focus_forward.1} parent=11 // pred_check_branch
        %164 = sbr.rel (%p162) target = $region24
      $region23: #{focus_forward.1} parent=11 // pred_region
        _
      $region24: #{focus_forward.1} parent=11 // pred_fallthru
        _
    $region12: #{focus_forward.1} parent=5 // pred_fallthru
      _
    %p165 = scmp.lt.s32.totalorder %s10, 2
    // Predicated region
    $region25: #{focus_forward.1} parent=5 // pred_check
      %p166 = pneg %p165
    $region26: #{focus_forward.1} parent=5 // pred_check_branch
      %168 = sbr.rel (%p166) target = $region28
    $region27: #{focus_forward.1} parent=5 // pred_region
      // Predicated region
      $region29: #{focus_forward.1} parent=27 // pred_check
        %p169 = pneg %p44
      $region30: #{focus_forward.1} parent=27 // pred_check_branch
        %171 = sbr.rel (%p169) target = $region32
      $region31: #{focus_forward.1} parent=27 // pred_region
        %p172 = scmp.lt.s32.totalorder %s17, 1
        %s173 = scalar_select %p172, %s17, 1
        %p174 = scmp.lt.s32.totalorder %s18, 0
        %s175 = scalar_select %p174, %s18, 0
        %s176 = smul.addr %s173, 2
        %s177 = sadd.s32 %s175, %s176
        %s178 = smul.addr %s177, 4
        %s179 = scalar_lea.vmem %s0, %s178
      $region32: #{focus_forward.1} parent=27 // pred_fallthru
        _
    $region28: #{focus_forward.1} parent=5 // pred_fallthru
      _
    %p180 = scmp.le.s32.totalorder 1, %s10
    %p181 = scmp.lt.s32.totalorder %s10, 3
    %p182 = pnand %p180, %p181
    %p183 = pneg %p182
    // Predicated region
    $region33: #{focus_forward.1} parent=5 // pred_check
      _
    $region34: #{focus_forward.1} parent=5 // pred_check_branch
      %185 = sbr.rel (%p182) target = $region36
    $region35: #{focus_forward.1} parent=5 // pred_region
      %s186 = ssub.s32 %s10, 1
      %p187 = scmp.lt.s32.totalorder %s19, 1
      %s188 = scalar_select %p187, %s19, 1
      %p189 = scmp.lt.s32.totalorder %s20, 0
      %s190 = scalar_select %p189, %s20, 0
      %s191 = smul.addr %s188, 2
      %s192 = sadd.s32 %s190, %s191
      %s193 = smul.addr %s192, 4
      %s194 = scalar_lea.vmem %s0, %s193
      %p195 = pneg %p50
      %p196 = pneg %p47
      %p197 = pneg %p71
      %p198 = pneg %p68
      %p199 = pneg %p92
      %p200 = pneg %p89
      %p201 = pneg %p113
      %p202 = pneg %p110
      %p203 = pneg %p141
      %p204 = pneg %p138
      %p205 = scmp.lt.s32.totalorder %s19, 1
      %s206 = scalar_select %p205, %s19, 1
      %p207 = scmp.lt.s32.totalorder %s20, 0
      %s208 = scalar_select %p207, %s20, 0
      %s209 = sadd.s32 %s208, %s206
      %s210 = smul.addr %s209, 4
      %s211 = scalar_lea.vmem %s4, %s210
      %p212 = scmp.lt.s32.totalorder %s19, 1
      %s213 = scalar_select %p212, %s19, 1
      %p214 = scmp.lt.s32.totalorder %s20, 0
      %s215 = scalar_select %p214, %s20, 0
      %s216 = smul.addr %s213, 2
      %s217 = sadd.s32 %s215, %s216
      %s218 = smul.addr %s217, 4
      %s219 = scalar_lea.vmem %s0, %s218
      %p220 = scmp.lt.s32.totalorder %s19, 1
      %s221 = scalar_select %p220, %s19, 1
      %p222 = scmp.lt.s32.totalorder %s20, 0
      %s223 = scalar_select %p222, %s20, 0
      %s224 = sadd.s32 %s223, %s221
      %s225 = smul.addr %s224, 4
      %s226 = scalar_lea.vmem %s4, %s225
      %v228 = vld [vmem:[%s1] sm:$0xf]
      %v229 = vld [vmem:[%s219] sm:$0xf]
      %v230 = vld [vmem:[%s219 + $0x4] sm:$0xf]
      %v233 = vunpack.c.l.b16 %v229
      %v234 = vunpack.c.l.b16 %v230
      %v235 = vpack.c.b16 %v234, %v233
      %vm237 = vcmask 130048
      %v239 = vsel %vm237, %v228, 0
      %241 = vmatprep.subr.bf16.mxu0 0
      %242 = vmatpush1.bf16.msra.mxu0 %v235
      %243 = vmatprep.subr.bf16.mxu0 0
      %244 = vmatpush1.bf16.msra.mxu0 0
      %245 = vmatprep.subr.bf16.mxu0 0
      %246 = vmatpush1.bf16.msra.mxu0 0
      %247 = vmatprep.subr.bf16.mxu0 0
      %248 = vmatpush1.bf16.msra.mxu0 0
      %249 = vmatprep.subr.bf16.mxu0 0
      %250 = vmatpush1.bf16.msra.mxu0 0
      %251 = vmatprep.subr.bf16.mxu0 0
      %252 = vmatpush1.bf16.msra.mxu0 0
      %253 = vmatprep.subr.bf16.mxu0 0
      %254 = vmatpush1.bf16.msra.mxu0 0
      %255 = vmatprep.subr.bf16.mxu0 0
      %256 = vmatpush1.bf16.msra.mxu0 0
      %257 = vmatprep.subr.bf16.mxu0 0
      %258 = vmatpush1.bf16.msra.mxu0 0
      %259 = vmatprep.subr.bf16.mxu0 0
      %260 = vmatpush1.bf16.msra.mxu0 0
      %261 = vmatprep.subr.bf16.mxu0 0
      %262 = vmatpush1.bf16.msra.mxu0 0
      %263 = vmatprep.subr.bf16.mxu0 0
      %264 = vmatpush1.bf16.msra.mxu0 0
      %265 = vmatprep.subr.bf16.mxu0 0
      %266 = vmatpush1.bf16.msra.mxu0 0
      %267 = vmatprep.subr.bf16.mxu0 0
      %268 = vmatpush1.bf16.msra.mxu0 0
      %269 = vmatprep.subr.bf16.mxu0 0
      %270 = vmatpush1.bf16.msra.mxu0 0
      %271 = vmatprep.subr.bf16.mxu0 0
      %272 = vmatpush1.bf16.msra.mxu0 0
      %273 = vmatprep.mubr.bf16.mxu0 0
      %274 = vmatmul.mubr.bf16.gmra.mrb[0].mxu0 %v239
      %v275 = vpop.f32.mrb[0].mxu0
      %v276 = vadd.f32 0.0, %v275
      %v277 = vpop.f32.mrb[0].mxu0
      %v278 = vpop.f32.mrb[0].mxu0
      %v279 = vpop.f32.mrb[0].mxu0
      %280 = vdwg.mxu0
      %v281 = vld [vmem:[%s2] sm:$0xff]
      %283 = vset.pattern.permute.xlu0 0
      %284 = vperm.xlu0 %283, %v281
      %v285 = vpop.permute.xlu0 %284
      %v287 = vmul.f32 %v276, %v285
      %v288 = vld [vmem:[%s3] sm:$0xff]
      %290 = vset.pattern.permute.xlu0 0
      %291 = vperm.xlu0 %290, %v288
      %v292 = vpop.permute.xlu0 %291
      %v294 = vadd.f32 %v287, %v292
      %v295 = vmul.f32 %v294, 0.5
      %v296 = vtanh.pop %v295
      %v297 = vadd.f32 %v296, 1.0
      %v298 = vmul.f32 %v295, %v297
      %v299 = vpack.c.bf16 %v298, %v298
      %vm300 = vcmask 519168
      %301 = vst.msk [vmem:[%s226] sm:$0xf] %vm300, %v299
      %p302 = scmp.lt.s32.totalorder %s19, 1
      %s303 = scalar_select %p302, %s19, 1
      %p304 = scmp.lt.s32.totalorder %s20, 0
      %s305 = scalar_select %p304, %s20, 0
      %s306 = sadd.s32 %s305, %s303
      %s307 = smul.addr %s306, 4
      %s308 = scalar_lea.vmem %s4, %s307
      // Predicated region
      $region37: #{focus_forward.1} parent=35 // pred_check
        %p309 = pneg %p138
      $region38: #{focus_forward.1} parent=35 // pred_check_branch
        %311 = sbr.rel (%p309) target = $region40
      $region39: #{focus_forward.1} parent=35 // pred_region
        _
      $region40: #{focus_forward.1} parent=35 // pred_fallthru
        _
    $region36: #{focus_forward.1} parent=5 // pred_fallthru
      _
    %p312 = scmp.le.s32.totalorder 2, %s10
    // Predicated region
    $region41: #{focus_forward.1} parent=5 // pred_check
      %p313 = pneg %p312
    $region42: #{focus_forward.1} parent=5 // pred_check_branch
      %315 = sbr.rel (%p313) target = $region44
    $region43: #{focus_forward.1} parent=5 // pred_region
      %s316 = ssub.s32 %s10, 2
      // Predicated region
      $region45: #{focus_forward.1} parent=43 // pred_check
        %p317 = pneg %p144
      $region46: #{focus_forward.1} parent=43 // pred_check_branch
        %319 = sbr.rel (%p317) target = $region48
      $region47: #{focus_forward.1} parent=43 // pred_region
        %p320 = scmp.lt.s32.totalorder %s21, 1
        %s321 = scalar_select %p320, %s21, 1
        %p322 = scmp.lt.s32.totalorder %s22, 0
        %s323 = scalar_select %p322, %s22, 0
        %s324 = sadd.s32 %s323, %s321
        %s325 = smul.addr %s324, 4
        %s326 = scalar_lea.vmem %s4, %s325
      $region48: #{focus_forward.1} parent=43 // pred_fallthru
        _
    $region44: #{focus_forward.1} parent=5 // pred_fallthru
      _
  $region6: #{focus_forward.1} parent=0 // loop_footer
    %s14 = sadd.s32 1, %s10
  $region7: #{focus_forward.1} parent=0 // loop_footer_branch
    %9 = sbr.rel target = $region3
  $region8: #{focus_forward.1} parent=0 // loop_exit
    _

</llo_original>
